<compile_context>
chip_gen: v7x
topology: tpu7x:2x2x1
jax: 0.10.0
libtpu: 0.0.40
codegen_flags: <defaults>
</compile_context>

<pallas_src>
import functools

import jax
import jax.numpy as jnp
import numpy as np
from jax.experimental import pallas as pl
from jax.experimental.pallas import tpu as pltpu

EPS = 1e-5                                  # fp32 LayerNorm eps (reference)
VMEM_LIMIT = 48 * 1024 * 1024               # explicit scoped-VMEM budget
CONV_VMEM_BUDGET = 20 * 1024 * 1024         # per-step working-set target (K2)


# ---------------------------------------------------------------------------
# helpers
# ---------------------------------------------------------------------------
def _pick_tile(n, target, align=8):
    """Largest multiple of `align` <= target dividing n, else n (full dim)."""
    if n <= target:
        return n
    t = (target // align) * align
    while t >= align:
        if n % t == 0:
            return t
        t -= align
    return n


def _pick_conv_tx(X, plane_bytes, out_plane_bytes,
                  budget=CONV_VMEM_BUDGET, max_tx=4):
    """x-planes per K2 grid step: largest divisor of X fitting the budget."""
    best = 1
    for tx in range(1, min(X, max_tx) + 1):
        if X % tx:
            continue
        need = 2 * ((tx + 2) * plane_bytes + tx * out_plane_bytes)  # 2x: dbl buf
        if need <= budget:
            best = tx
    return best


def _params_1d(extra_axes=1):
    return pltpu.CompilerParams(
        dimension_semantics=("parallel",) * extra_axes,
        vmem_limit_bytes=VMEM_LIMIT)


# ---------------------------------------------------------------------------
# Pallas kernels
# ---------------------------------------------------------------------------
def _ln_qkv_kernel(x_ref, w_ref, o_ref):
    """ChanLayerNorm (g folded into W) fused with the q|k|v 1x1x1 projection."""
    x = x_ref[...]                                        # (tr, C) f32
    mean = jnp.mean(x, axis=-1, keepdims=True)
    var = jnp.mean((x - mean) ** 2, axis=-1, keepdims=True)
    xn = (x - mean) * jax.lax.rsqrt(var + EPS)
    o_ref[...] = jnp.dot(xn.astype(w_ref.dtype), w_ref[...],
                         preferred_element_type=jnp.float32).astype(o_ref.dtype)


def _dwconv3d_kernel(*refs, TX, Y, Z):
    """Depthwise 3x3x3 (padding=1): 27-tap MAC over TX+2 halo'd x-planes."""
    planes = refs[:TX + 2]                                # each (1, Y+2, Z+2, C3)
    w_ref = refs[TX + 2]                                  # (27, 1, 1, C3) f32
    o_ref = refs[TX + 3]                                  # (TX, Y, Z, C3)
    w = w_ref[...]
    for t in range(TX):
        acc = None
        k = 0
        for j in range(3):                                # x-1, x, x+1 planes
            plane = planes[t + j][0].astype(jnp.float32)  # (Y+2, Z+2, C3)
            for dy in range(3):
                for dz in range(3):
                    term = plane[dy:dy + Y, dz:dz + Z, :] * w[k]
                    acc = term if acc is None else acc + term
                    k += 1
        o_ref[t] = acc.astype(o_ref.dtype)


def _flash_attn_kernel(q_ref, k_ref, v_ref, o_ref, m_sc, l_sc, acc_sc,
                       *, scale, approx):
    """Online-softmax attention for all heads of one batch / q-tile."""
    ki = pl.program_id(2)

    @pl.when(ki == 0)
    def _():
        m_sc[...] = jnp.full(m_sc.shape, -jnp.inf, m_sc.dtype)
        l_sc[...] = jnp.zeros(l_sc.shape, l_sc.dtype)
        acc_sc[...] = jnp.zeros(acc_sc.shape, acc_sc.dtype)

    q = q_ref[...] * scale                                # (H, tq, D)
    k = k_ref[...]                                        # (H, tk, D)
    v = v_ref[...]                                        # (H, tk, D)
    s = jnp.einsum('hqd,hkd->hqk', q, k,
                   preferred_element_type=jnp.float32)    # (H, tq, tk) f32
    m_prev = m_sc[...]
    m_new = jnp.maximum(m_prev, jnp.max(s, axis=-1, keepdims=True))
    alpha = jnp.exp(m_prev - m_new)
    p = jnp.exp(s - m_new)
    l_sc[...] = alpha * l_sc[...] + jnp.sum(p, axis=-1, keepdims=True)
    acc_sc[...] = alpha * acc_sc[...] + jnp.einsum(
        'hqk,hkd->hqd', p.astype(v.dtype), v,
        preferred_element_type=jnp.float32)
    m_sc[...] = m_new

    @pl.when(ki == pl.num_programs(2) - 1)
    def _():
        inv_l = pl.reciprocal(l_sc[...], approx=approx)   # deferred softmax div
        out = acc_sc[...] * inv_l                         # (H, tq, D)
        # lane-dense store: all heads concatenated along the lane axis.
        o_ref[0] = jnp.concatenate(
            [out[h] for h in range(out.shape[0])], axis=-1).astype(o_ref.dtype)


def _mish_proj_ln_kernel(x_ref, w_ref, g_ref, o_ref):
    """Fused Mish -> 1x1x1 out projection -> final ChanLayerNorm."""
    x = x_ref[...].astype(jnp.float32)
    softplus = jnp.maximum(x, 0.0) + jnp.log(1.0 + jnp.exp(-jnp.abs(x)))
    x = x * jnp.tanh(softplus)                            # Mish (f32)
    y = jnp.dot(x.astype(w_ref.dtype), w_ref[...],
                preferred_element_type=jnp.float32)
    mean = jnp.mean(y, axis=-1, keepdims=True)
    var = jnp.mean((y - mean) ** 2, axis=-1, keepdims=True)
    o_ref[...] = (y - mean) * jax.lax.rsqrt(var + EPS) * g_ref[...]


# ---------------------------------------------------------------------------
# pallas_call wrappers
# ---------------------------------------------------------------------------
def ln_qkv_proj(x_rows, w_qkv, out_dtype):
    R, C = x_rows.shape
    C3 = w_qkv.shape[1]
    tr = _pick_tile(R, 1024)
    return pl.pallas_call(
        _ln_qkv_kernel,
        out_shape=jax.ShapeDtypeStruct((R, C3), out_dtype),
        grid=(R // tr,),
        in_specs=[pl.BlockSpec((tr, C), lambda i: (i, 0)),
                  pl.BlockSpec((C, C3), lambda i: (0, 0))],
        out_specs=pl.BlockSpec((tr, C3), lambda i: (i, 0)),
        compiler_params=_params_1d(1),
    )(x_rows, w_qkv)


def depthwise_conv3d(h_pad_flat, w_dw, B, X, Y, Z, out_dtype):
    """h_pad_flat: (B*(X+2), Y+2, Z+2, C3) zero-padded volume (flat over b,x)."""
    _, Yp, Zp, C3 = h_pad_flat.shape
    Xp = X + 2
    plane_bytes = Yp * Zp * C3 * jnp.dtype(h_pad_flat.dtype).itemsize
    out_plane_bytes = Y * Z * C3 * jnp.dtype(out_dtype).itemsize
    tx = _pick_conv_tx(X, plane_bytes, out_plane_bytes)
    kern = functools.partial(_dwconv3d_kernel, TX=tx, Y=Y, Z=Z)

    plane_specs = [
        pl.BlockSpec((1, Yp, Zp, C3),
                     lambda b, xg, j=j: (b * Xp + xg * tx + j, 0, 0, 0))
        for j in range(tx + 2)
    ]
    w_spec = pl.BlockSpec((27, 1, 1, C3), lambda b, xg: (0, 0, 0, 0))
    out_spec = pl.BlockSpec((tx, Y, Z, C3),
                            lambda b, xg: (b * (X // tx) + xg, 0, 0, 0))
    return pl.pallas_call(
        kern,
        out_shape=jax.ShapeDtypeStruct((B * X, Y, Z, C3), out_dtype),
        grid=(B, X // tx),
        in_specs=plane_specs + [w_spec],
        out_specs=out_spec,
        compiler_params=pltpu.CompilerParams(
            dimension_semantics=("parallel", "parallel"),
            vmem_limit_bytes=VMEM_LIMIT),
    )(*([h_pad_flat] * (tx + 2)), w_dw)


def flash_attention(qkv_flat, B, H, N, D, scale, approx, out_dtype):
    """qkv_flat: (3*B*H, N, D); returns (B, N, H*D) in out_dtype."""
    tq = _pick_tile(N, 256)
    tk = _pick_tile(N, 256)
    kern = functools.partial(_flash_attn_kernel, scale=scale, approx=approx)
    q_spec = pl.BlockSpec((H, tq, D), lambda b, qi, ki: (b, qi, 0))
    k_spec = pl.BlockSpec((H, tk, D), lambda b, qi, ki: (B + b, ki, 0))
    v_spec = pl.BlockSpec((H, tk, D), lambda b, qi, ki: (2 * B + b, ki, 0))
    o_spec = pl.BlockSpec((1, tq, H * D), lambda b, qi, ki: (b, qi, 0))
    return pl.pallas_call(
        kern,
        out_shape=jax.ShapeDtypeStruct((B, N, H * D), out_dtype),
        grid=(B, N // tq, N // tk),
        in_specs=[q_spec, k_spec, v_spec],
        out_specs=o_spec,
        scratch_shapes=[pltpu.VMEM((H, tq, 1), jnp.float32),   # m
                        pltpu.VMEM((H, tq, 1), jnp.float32),   # l
                        pltpu.VMEM((H, tq, D), jnp.float32)],  # acc
        compiler_params=pltpu.CompilerParams(
            dimension_semantics=("parallel", "parallel", "arbitrary"),
            vmem_limit_bytes=VMEM_LIMIT),
    )(qkv_flat, qkv_flat, qkv_flat)


def mish_proj_layernorm(x_rows, w_out, g_out):
    R, Ci = x_rows.shape
    Co = w_out.shape[1]
    tr = _pick_tile(R, 1024)
    return pl.pallas_call(
        _mish_proj_ln_kernel,
        out_shape=jax.ShapeDtypeStruct((R, Co), jnp.float32),
        grid=(R // tr,),
        in_specs=[pl.BlockSpec((tr, Ci), lambda i: (i, 0)),
                  pl.BlockSpec((Ci, Co), lambda i: (0, 0)),
                  pl.BlockSpec((1, Co), lambda i: (0, 0))],
        out_specs=pl.BlockSpec((tr, Co), lambda i: (i, 0)),
        compiler_params=_params_1d(1),
    )(x_rows, w_out, g_out)


# ---------------------------------------------------------------------------
# Forward pass (glue in plain JAX, hot paths in Pallas)
# ---------------------------------------------------------------------------
def softmax_attention_forward(fmap, params, heads, dim_head,
                              matmul_dtype=jnp.bfloat16):
    """fmap: NCDHW (b, dim, x, y, z) float32 -- same as the PyTorch module."""
    B, C, X, Y, Z = fmap.shape
    inner = heads * dim_head
    C3 = 3 * inner
    N = X * Y * Z
    scale = dim_head ** -0.5
    cdt = matmul_dtype
    approx = (matmul_dtype == jnp.bfloat16)

    # NCDHW -> channel-last rows (B*N, C)
    x_rows = jnp.transpose(fmap, (0, 2, 3, 4, 1)).reshape(B * N, C)

    # Concatenated q|k|v weights with the LayerNorm gain folded in:
    # ((x-mu)/sigma * g) @ W == ((x-mu)/sigma) @ (diag(g) @ W).
    w_qkv = (jnp.concatenate([params["wq1"], params["wk1"], params["wv1"]],
                             axis=1)
             * params["g_norm"][:, None]).astype(cdt)              # (C, 3*inner)
    w_dw = jnp.concatenate([params["wq_dw"], params["wk_dw"], params["wv_dw"]],
                           axis=1).reshape(27, 1, 1, C3)           # f32 taps
    g_out = params["g_out"].reshape(1, C)
    w_out = params["w_out"].astype(cdt)

    # K1: LayerNorm + fused qkv 1x1x1 projection (x read from HBM once).
    h_rows = ln_qkv_proj(x_rows, w_qkv, out_dtype=cdt)             # (B*N, 3I)

    # K2: depthwise 3x3x3 conv (padding=1) over halo'd spatial planes.
    # TODO(synk): the spatial zero-pad and the head-split transpose below are
    # XLA-side data movement; they could be folded into K1/K3 with halo
    # recompute + in-kernel head slicing for another ~2 HBM passes saved.
    h_pad = jnp.pad(h_rows.reshape(B, X, Y, Z, C3),
                    ((0, 0), (1, 1), (1, 1), (1, 1), (0, 0)))
    h_pad_flat = h_pad.reshape(B * (X + 2), Y + 2, Z + 2, C3)
    qkv = depthwise_conv3d(h_pad_flat, w_dw, B, X, Y, Z, out_dtype=cdt)

    # 'b (3 h c) x y z' -> (3*b*h, n, c): single transpose pass.
    qkv_flat = jnp.transpose(
        qkv.reshape(B, N, 3, heads, dim_head),
        (2, 0, 3, 1, 4)).reshape(3 * B * heads, N, dim_head)

    # K3: flash attention, all heads per step, lane-dense (N, heads*dim_head).
    att_out = flash_attention(qkv_flat, B, heads, N, dim_head, scale, approx,
                              out_dtype=cdt)

    # K4: Mish -> to_out 1x1x1 conv -> final ChanLayerNorm (fused, f32 math).
    out_rows = mish_proj_layernorm(att_out.reshape(B * N, inner), w_out, g_out)

    return jnp.transpose(out_rows.reshape(B, X, Y, Z, C),
                         (0, 4, 1, 2, 3))                          # NCDHW


# ---------------------------------------------------------------------------
# Pure-JAX reference (for correctness checking)
# ---------------------------------------------------------------------------
def reference_forward(fmap, params, heads, dim_head):
    B, C, X, Y, Z = fmap.shape
    inner = heads * dim_head
    N = X * Y * Z
    scale = dim_head ** -0.5
    x = jnp.transpose(fmap, (0, 2, 3, 4, 1))

    def chan_ln(t, g):
        mean = jnp.mean(t, -1, keepdims=True)
        var = jnp.mean((t - mean) ** 2, -1, keepdims=True)
        return (t - mean) * jax.lax.rsqrt(var + EPS) * g

    x = chan_ln(x, params["g_norm"])

    def project(w1, w_dw):
        h = jnp.einsum('bxyzc,cd->bxyzd', x, w1)
        rhs = w_dw.reshape(3, 3, 3, 1, inner)
        h = jax.lax.conv_general_dilated(
            h, rhs, window_strides=(1, 1, 1), padding=((1, 1),) * 3,
            dimension_numbers=("NDHWC", "DHWIO", "NDHWC"),
            feature_group_count=inner)
        return h.reshape(B, N, inner)

    def split(t):
        return (t.reshape(B, N, heads, dim_head)
                .transpose(0, 2, 1, 3).reshape(B * heads, N, dim_head))

    q, k, v = (split(project(params[f"w{n}1"], params[f"w{n}_dw"]))
               for n in ("q", "k", "v"))
    att = jax.nn.softmax(jnp.einsum('bqd,bkd->bqk', q, k) * scale, axis=-1)
    o = jnp.einsum('bnk,bkd->bnd', att, v)
    o = (o.reshape(B, heads, N, dim_head)
         .transpose(0, 2, 1, 3).reshape(B, N, inner))
    o = o * jnp.tanh(jax.nn.softplus(o))
    o = jnp.einsum('bnc,cd->bnd', o, params["w_out"])
    o = chan_ln(o, params["g_out"])
    return jnp.transpose(o.reshape(B, X, Y, Z, C), (0, 4, 1, 2, 3))


# ---------------------------------------------------------------------------
# Deterministic parameter init (synthetic; matches the module's shapes)
# ---------------------------------------------------------------------------
def init_params(key, dim, heads, dim_head):
    inner = heads * dim_head
    ks = jax.random.split(key, 7)

    def init(k, shape, fan_in):
        return jax.random.normal(k, shape, jnp.float32) / np.sqrt(fan_in)

    return {
        "g_norm": jnp.ones((dim,), jnp.float32),          # ChanLayerNorm g
        "wq1": init(ks[0], (dim, inner), dim),            # 1x1x1 conv weights
        "wk1": init(ks[1], (dim, inner), dim),
        "wv1": init(ks[2], (dim, inner), dim),
        "wq_dw": init(ks[3], (27, inner), 27),            # depthwise 3x3x3
        "wk_dw": init(ks[4], (27, inner), 27),
        "wv_dw": init(ks[5], (27, inner), 27),
        "w_out": init(ks[6], (inner, dim), inner),        # to_out 1x1x1 conv
        "g_out": jnp.ones((dim,), jnp.float32),           # final ChanLayerNorm g
    }


if __name__ == "__main__":
    B, dim, X = 2, 8, 4
    heads, dim_head = 2, 16

    root = jax.random.PRNGKey(0)
    k_params, k_input = jax.random.split(root)
    params = init_params(k_params, dim, heads, dim_head)
    fmap = jax.random.normal(k_input, (B, dim, X, X, X), jnp.float32)

    ref = jax.block_until_ready(reference_forward(fmap, params, heads, dim_head))

    # Exact-math path (f32 MXU operands) -> tight tolerance.
    out_f32 = softmax_attention_forward(fmap, params, heads, dim_head,
                                        matmul_dtype=jnp.float32)
    out_f32 = jax.block_until_ready(out_f32)
    assert out_f32.shape == (B, dim, X, X, X)
    np.testing.assert_allclose(np.asarray(out_f32), np.asarray(ref),
                               rtol=1e-3, atol=1e-3)

    # Performance path (bf16 MXU operands, f32 accumulation) -> loose tolerance.
    out_bf16 = softmax_attention_forward(fmap, params, heads, dim_head,
                                         matmul_dtype=jnp.bfloat16)
    out_bf16 = jax.block_until_ready(out_bf16)
    np.testing.assert_allclose(np.asarray(out_bf16), np.asarray(ref),
                               rtol=5e-2, atol=5e-2)

    print("KERNEL_OK")
</pallas_src>

<mosaic_0001>
module attributes {stable_mosaic.version = 11 : i64} {
  func.func @_ln_qkv_kernel(%arg0: i32, %arg1: memref<128x8xf32, #tpu.memory_space<vmem>>, %arg2: memref<8x96xf32, #tpu.memory_space<vmem>>, %arg3: memref<128x96xf32, #tpu.memory_space<vmem>>) attributes {dimension_semantics = [#tpu.dimension_semantics<parallel>], iteration_bounds = array<i64: 1>, scalar_prefetch = 0 : i64, scratch_operands = 0 : i64, tpu.core_type = #tpu.core_type<tc>, window_params = [{transform_indices = @transform_0, window_bounds = array<i64: 128, 8>}, {pipeline_mode = #tpu.pipeline_mode<synchronous>, transform_indices = @transform_1, window_bounds = array<i64: 8, 96>}, {transform_indices = @transform_2, window_bounds = array<i64: 128, 96>}]} {
    %c0 = arith.constant 0 : index
    %c0_0 = arith.constant 0 : index
    %0 = vector.load %arg1[%c0, %c0_0] : memref<128x8xf32, #tpu.memory_space<vmem>>, vector<128x8xf32>
    %cst = arith.constant dense<0.000000e+00> : vector<128xf32>
    %1 = vector.multi_reduction <add>, %0, %cst [1] : vector<128x8xf32> to vector<128xf32>
    %2 = vector.shape_cast %1 : vector<128xf32> to vector<128x1xf32>
    %cst_1 = arith.constant 8.000000e+00 : f32
    %3 = vector.broadcast %cst_1 : f32 to vector<128x1xf32>
    %4 = arith.divf %2, %3 : vector<128x1xf32>
    %5 = vector.broadcast %4 : vector<128x1xf32> to vector<128x8xf32>
    %6 = arith.subf %0, %5 : vector<128x8xf32>
    %7 = arith.mulf %6, %6 : vector<128x8xf32>
    %cst_2 = arith.constant dense<0.000000e+00> : vector<128xf32>
    %8 = vector.multi_reduction <add>, %7, %cst_2 [1] : vector<128x8xf32> to vector<128xf32>
    %9 = vector.shape_cast %8 : vector<128xf32> to vector<128x1xf32>
    %cst_3 = arith.constant 8.000000e+00 : f32
    %10 = vector.broadcast %cst_3 : f32 to vector<128x1xf32>
    %11 = arith.divf %9, %10 : vector<128x1xf32>
    %12 = vector.broadcast %4 : vector<128x1xf32> to vector<128x8xf32>
    %13 = arith.subf %0, %12 : vector<128x8xf32>
    %cst_4 = arith.constant 9.99999974E-6 : f32
    %14 = vector.broadcast %cst_4 : f32 to vector<128x1xf32>
    %15 = arith.addf %11, %14 : vector<128x1xf32>
    %16 = math.rsqrt %15 : vector<128x1xf32>
    %17 = vector.broadcast %16 : vector<128x1xf32> to vector<128x8xf32>
    %18 = arith.mulf %13, %17 : vector<128x8xf32>
    %c0_5 = arith.constant 0 : index
    %c0_6 = arith.constant 0 : index
    %19 = vector.load %arg2[%c0_5, %c0_6] : memref<8x96xf32, #tpu.memory_space<vmem>>, vector<8x96xf32>
    %cst_7 = arith.constant dense<0.000000e+00> : vector<128x96xf32>
    %20 = tpu.matmul %18, %19, %cst_7 {dimension_numbers = #tpu.dot_dimension_numbers<[1], [0], [0], [1], [0, 0, 1, 1], [], []>} : vector<128x8xf32>, vector<8x96xf32>, vector<128x96xf32> -> vector<128x96xf32>
    %c0_8 = arith.constant 0 : index
    %c0_9 = arith.constant 0 : index
    %21 = vector.load %arg3[%c0_8, %c0_9] : memref<128x96xf32, #tpu.memory_space<vmem>>, vector<128x96xf32>
    tpu.vector_store %arg3[%c0_8, %c0_9], %20 {strides = array<i32>} : memref<128x96xf32, #tpu.memory_space<vmem>>, vector<128x96xf32>,
    return
  }
  func.func @transform_0(%arg0: i32) -> (i32, i32) {
    %c0_i32 = arith.constant 0 : i32
    %c0_i32_0 = arith.constant 0 : i32
    return %arg0, %c0_i32 : i32, i32
  }
  func.func @transform_1(%arg0: i32) -> (i32, i32) {
    %c0_i32 = arith.constant 0 : i32
    %c0_i32_0 = arith.constant 0 : i32
    %c0_i32_1 = arith.constant 0 : i32
    return %c0_i32, %c0_i32_0 : i32, i32
  }
  func.func @transform_2(%arg0: i32) -> (i32, i32) {
    %c0_i32 = arith.constant 0 : i32
    %c0_i32_0 = arith.constant 0 : i32
    return %arg0, %c0_i32 : i32, i32
  }
}

</mosaic_0001>

<llo_original>
// kernel: tpu_custom_call.1
$region0: #{tpu_custom_call.1}
  #allocation0 [shape = 'u32[]', space=smem, size = 0x4, offset = 0x4, fixed_abs, tag = 'smem constant byte address 0x4 - core index']
  #allocation1 [shape = 'u32[144,128]{1,0:T(1,128)}', space=vmem, size = 0x12000, scoped, tag = 'internal scratch']
  %s0 = inlined_call_operand.vmem [shape: f32[128,8], index: 0, kind: input, shape index: {}]
  %s1 = inlined_call_operand.vmem [shape: f32[8,96], index: 1, kind: input, shape index: {}]
  %s2 = inlined_call_operand.vmem [shape: f32[128,96], index: 2, kind: output, shape index: {}]
  %s3 = sld [smem:[#allocation0]]
  $region18: #{tpu_custom_call.1} parent=0
    _
  %s5 = ssub.s32 1, %s3
  %s6 = scalar_select 0, %s5, %s3
  // Predicated region
  $region2: #{tpu_custom_call.1} parent=0 // pred_check
    _
  $region3: #{tpu_custom_call.1} parent=0 // pred_check_branch
    %8 = sbr.rel (0) target = $region5
  $region4: #{tpu_custom_call.1} parent=0 // pred_region
    _
  $region5: #{tpu_custom_call.1} parent=0 // pred_fallthru
    _
  // Predicated region
  $region6: #{tpu_custom_call.1} parent=0 // pred_check
    _
  $region7: #{tpu_custom_call.1} parent=0 // pred_check_branch
    %10 = sbr.rel (0) target = $region9
  $region8: #{tpu_custom_call.1} parent=0 // pred_region
    _
  $region9: #{tpu_custom_call.1} parent=0 // pred_fallthru
    _
  %v11 = vld [vmem:[%s0] sm:$0xff]
  %v12 = vld [vmem:[%s0 + $0x8] sm:$0xff]
  %v13 = vld [vmem:[%s0 + $0x10] sm:$0xff]
  %v14 = vld [vmem:[%s0 + $0x18] sm:$0xff]
  %v15 = vld [vmem:[%s0 + $0x20] sm:$0xff]
  %v16 = vld [vmem:[%s0 + $0x28] sm:$0xff]
  %v17 = vld [vmem:[%s0 + $0x30] sm:$0xff]
  %v18 = vld [vmem:[%s0 + $0x38] sm:$0xff]
  %v19 = vld [vmem:[%s0 + $0x40] sm:$0xff]
  %v20 = vld [vmem:[%s0 + $0x48] sm:$0xff]
  %v21 = vld [vmem:[%s0 + $0x50] sm:$0xff]
  %v22 = vld [vmem:[%s0 + $0x58] sm:$0xff]
  %v23 = vld [vmem:[%s0 + $0x60] sm:$0xff]
  %v24 = vld [vmem:[%s0 + $0x68] sm:$0xff]
  %v25 = vld [vmem:[%s0 + $0x70] sm:$0xff]
  %v26 = vld [vmem:[%s0 + $0x78] sm:$0xff]
  %vm27 = vcmask 64512
  %v28 = vsel %vm27, %v11, 0.0
  %29 = vadd.xlane.f32.xlu0 %v28
  %v30 = vpop.xlane.xlu0 %29
  %v31 = vsel %vm27, %v12, 0.0
  %32 = vadd.xlane.f32.xlu0 %v31
  %v33 = vpop.xlane.xlu0 %32
  %v34 = vsel %vm27, %v13, 0.0
  %35 = vadd.xlane.f32.xlu0 %v34
  %v36 = vpop.xlane.xlu0 %35
  %v37 = vsel %vm27, %v14, 0.0
  %38 = vadd.xlane.f32.xlu0 %v37
  %v39 = vpop.xlane.xlu0 %38
  %v40 = vsel %vm27, %v15, 0.0
  %41 = vadd.xlane.f32.xlu0 %v40
  %v42 = vpop.xlane.xlu0 %41
  %v43 = vsel %vm27, %v16, 0.0
  %44 = vadd.xlane.f32.xlu0 %v43
  %v45 = vpop.xlane.xlu0 %44
  %v46 = vsel %vm27, %v17, 0.0
  %47 = vadd.xlane.f32.xlu0 %v46
  %v48 = vpop.xlane.xlu0 %47
  %v49 = vsel %vm27, %v18, 0.0
  %50 = vadd.xlane.f32.xlu0 %v49
  %v51 = vpop.xlane.xlu0 %50
  %v52 = vsel %vm27, %v19, 0.0
  %53 = vadd.xlane.f32.xlu0 %v52
  %v54 = vpop.xlane.xlu0 %53
  %v55 = vsel %vm27, %v20, 0.0
  %56 = vadd.xlane.f32.xlu0 %v55
  %v57 = vpop.xlane.xlu0 %56
  %v58 = vsel %vm27, %v21, 0.0
  %59 = vadd.xlane.f32.xlu0 %v58
  %v60 = vpop.xlane.xlu0 %59
  %v61 = vsel %vm27, %v22, 0.0
  %62 = vadd.xlane.f32.xlu0 %v61
  %v63 = vpop.xlane.xlu0 %62
  %v64 = vsel %vm27, %v23, 0.0
  %65 = vadd.xlane.f32.xlu0 %v64
  %v66 = vpop.xlane.xlu0 %65
  %v67 = vsel %vm27, %v24, 0.0
  %68 = vadd.xlane.f32.xlu0 %v67
  %v69 = vpop.xlane.xlu0 %68
  %v70 = vsel %vm27, %v25, 0.0
  %71 = vadd.xlane.f32.xlu0 %v70
  %v72 = vpop.xlane.xlu0 %71
  %v73 = vsel %vm27, %v26, 0.0
  %74 = vadd.xlane.f32.xlu0 %v73
  %v75 = vpop.xlane.xlu0 %74
  %v76 = vrcp.pop 8.0
  %v77 = vmul.f32 %v30, %v76
  %v78 = vmul.f32 %v33, %v76
  %v79 = vmul.f32 %v36, %v76
  %v80 = vmul.f32 %v39, %v76
  %v81 = vmul.f32 %v42, %v76
  %v82 = vmul.f32 %v45, %v76
  %v83 = vmul.f32 %v48, %v76
  %v84 = vmul.f32 %v51, %v76
  %v85 = vmul.f32 %v54, %v76
  %v86 = vmul.f32 %v57, %v76
  %v87 = vmul.f32 %v60, %v76
  %v88 = vmul.f32 %v63, %v76
  %v89 = vmul.f32 %v66, %v76
  %v90 = vmul.f32 %v69, %v76
  %v91 = vmul.f32 %v72, %v76
  %v92 = vmul.f32 %v75, %v76
  %v93 = vsub.f32 %v11, %v77
  %v94 = vsub.f32 %v12, %v78
  %v95 = vsub.f32 %v13, %v79
  %v96 = vsub.f32 %v14, %v80
  %v97 = vsub.f32 %v15, %v81
  %v98 = vsub.f32 %v16, %v82
  %v99 = vsub.f32 %v17, %v83
  %v100 = vsub.f32 %v18, %v84
  %v101 = vsub.f32 %v19, %v85
  %v102 = vsub.f32 %v20, %v86
  %v103 = vsub.f32 %v21, %v87
  %v104 = vsub.f32 %v22, %v88
  %v105 = vsub.f32 %v23, %v89
  %v106 = vsub.f32 %v24, %v90
  %v107 = vsub.f32 %v25, %v91
  %v108 = vsub.f32 %v26, %v92
  %v109 = vmul.f32 %v93, %v93
  %v110 = vmul.f32 %v94, %v94
  %v111 = vmul.f32 %v95, %v95
  %v112 = vmul.f32 %v96, %v96
  %v113 = vmul.f32 %v97, %v97
  %v114 = vmul.f32 %v98, %v98
  %v115 = vmul.f32 %v99, %v99
  %v116 = vmul.f32 %v100, %v100
  %v117 = vmul.f32 %v101, %v101
  %v118 = vmul.f32 %v102, %v102
  %v119 = vmul.f32 %v103, %v103
  %v120 = vmul.f32 %v104, %v104
  %v121 = vmul.f32 %v105, %v105
  %v122 = vmul.f32 %v106, %v106
  %v123 = vmul.f32 %v107, %v107
  %v124 = vmul.f32 %v108, %v108
  %v125 = vsel %vm27, %v109, 0.0
  %126 = vadd.xlane.f32.xlu0 %v125
  %v127 = vpop.xlane.xlu0 %126
  %v128 = vsel %vm27, %v110, 0.0
  %129 = vadd.xlane.f32.xlu0 %v128
  %v130 = vpop.xlane.xlu0 %129
  %v131 = vsel %vm27, %v111, 0.0
  %132 = vadd.xlane.f32.xlu0 %v131
  %v133 = vpop.xlane.xlu0 %132
  %v134 = vsel %vm27, %v112, 0.0
  %135 = vadd.xlane.f32.xlu0 %v134
  %v136 = vpop.xlane.xlu0 %135
  %v137 = vsel %vm27, %v113, 0.0
  %138 = vadd.xlane.f32.xlu0 %v137
  %v139 = vpop.xlane.xlu0 %138
  %v140 = vsel %vm27, %v114, 0.0
  %141 = vadd.xlane.f32.xlu0 %v140
  %v142 = vpop.xlane.xlu0 %141
  %v143 = vsel %vm27, %v115, 0.0
  %144 = vadd.xlane.f32.xlu0 %v143
  %v145 = vpop.xlane.xlu0 %144
  %v146 = vsel %vm27, %v116, 0.0
  %147 = vadd.xlane.f32.xlu0 %v146
  %v148 = vpop.xlane.xlu0 %147
  %v149 = vsel %vm27, %v117, 0.0
  %150 = vadd.xlane.f32.xlu0 %v149
  %v151 = vpop.xlane.xlu0 %150
  %v152 = vsel %vm27, %v118, 0.0
  %153 = vadd.xlane.f32.xlu0 %v152
  %v154 = vpop.xlane.xlu0 %153
  %v155 = vsel %vm27, %v119, 0.0
  %156 = vadd.xlane.f32.xlu0 %v155
  %v157 = vpop.xlane.xlu0 %156
  %v158 = vsel %vm27, %v120, 0.0
  %159 = vadd.xlane.f32.xlu0 %v158
  %v160 = vpop.xlane.xlu0 %159
  %v161 = vsel %vm27, %v121, 0.0
  %162 = vadd.xlane.f32.xlu0 %v161
  %v163 = vpop.xlane.xlu0 %162
  %v164 = vsel %vm27, %v122, 0.0
  %165 = vadd.xlane.f32.xlu0 %v164
  %v166 = vpop.xlane.xlu0 %165
  %v167 = vsel %vm27, %v123, 0.0
  %168 = vadd.xlane.f32.xlu0 %v167
  %v169 = vpop.xlane.xlu0 %168
  %v170 = vsel %vm27, %v124, 0.0
  %171 = vadd.xlane.f32.xlu0 %v170
  %v172 = vpop.xlane.xlu0 %171
  %v173 = vmul.f32 %v127, %v76
  %v174 = vmul.f32 %v130, %v76
  %v175 = vmul.f32 %v133, %v76
  %v176 = vmul.f32 %v136, %v76
  %v177 = vmul.f32 %v139, %v76
  %v178 = vmul.f32 %v142, %v76
  %v179 = vmul.f32 %v145, %v76
  %v180 = vmul.f32 %v148, %v76
  %v181 = vmul.f32 %v151, %v76
  %v182 = vmul.f32 %v154, %v76
  %v183 = vmul.f32 %v157, %v76
  %v184 = vmul.f32 %v160, %v76
  %v185 = vmul.f32 %v163, %v76
  %v186 = vmul.f32 %v166, %v76
  %v187 = vmul.f32 %v169, %v76
  %v188 = vmul.f32 %v172, %v76
  %v189 = vadd.f32 %v173, 1e-05
  %v190 = vadd.f32 %v174, 1e-05
  %v191 = vadd.f32 %v175, 1e-05
  %v192 = vadd.f32 %v176, 1e-05
  %v193 = vadd.f32 %v177, 1e-05
  %v194 = vadd.f32 %v178, 1e-05
  %v195 = vadd.f32 %v179, 1e-05
  %v196 = vadd.f32 %v180, 1e-05
  %v197 = vadd.f32 %v181, 1e-05
  %v198 = vadd.f32 %v182, 1e-05
  %v199 = vadd.f32 %v183, 1e-05
  %v200 = vadd.f32 %v184, 1e-05
  %v201 = vadd.f32 %v185, 1e-05
  %v202 = vadd.f32 %v186, 1e-05
  %v203 = vadd.f32 %v187, 1e-05
  %v204 = vadd.f32 %v188, 1e-05
  %v205 = vrsqrt.pop %v189
  %v206 = vrsqrt.pop %v190
  %v207 = vrsqrt.pop %v191
  %v208 = vrsqrt.pop %v192
  %v209 = vrsqrt.pop %v193
  %v210 = vrsqrt.pop %v194
  %v211 = vrsqrt.pop %v195
  %v212 = vrsqrt.pop %v196
  %v213 = vrsqrt.pop %v197
  %v214 = vrsqrt.pop %v198
  %v215 = vrsqrt.pop %v199
  %v216 = vrsqrt.pop %v200
  %v217 = vrsqrt.pop %v201
  %v218 = vrsqrt.pop %v202
  %v219 = vrsqrt.pop %v203
  %v220 = vrsqrt.pop %v204
  %v221 = vmul.f32 %v93, %v205
  %v222 = vmul.f32 %v94, %v206
  %v223 = vmul.f32 %v95, %v207
  %v224 = vmul.f32 %v96, %v208
  %v225 = vmul.f32 %v97, %v209
  %v226 = vmul.f32 %v98, %v210
  %v227 = vmul.f32 %v99, %v211
  %v228 = vmul.f32 %v100, %v212
  %v229 = vmul.f32 %v101, %v213
  %v230 = vmul.f32 %v102, %v214
  %v231 = vmul.f32 %v103, %v215
  %v232 = vmul.f32 %v104, %v216
  %v233 = vmul.f32 %v105, %v217
  %v234 = vmul.f32 %v106, %v218
  %v235 = vmul.f32 %v107, %v219
  %v236 = vmul.f32 %v108, %v220
  %v237 = vld [vmem:[%s1] sm:$0xff]
  %v239 = vsel %vm27, %v221, 0
  %v242 = vsel %vm27, %v222, 0
  %v245 = vsel %vm27, %v223, 0
  %v248 = vsel %vm27, %v224, 0
  %v251 = vsel %vm27, %v225, 0
  %v254 = vsel %vm27, %v226, 0
  %v257 = vsel %vm27, %v227, 0
  %v260 = vsel %vm27, %v228, 0
  %v263 = vsel %vm27, %v229, 0
  %v266 = vsel %vm27, %v230, 0
  %v269 = vsel %vm27, %v231, 0
  %v272 = vsel %vm27, %v232, 0
  %v275 = vsel %vm27, %v233, 0
  %v278 = vsel %vm27, %v234, 0
  %v281 = vsel %vm27, %v235, 0
  %v284 = vsel %vm27, %v236, 0
  %286 = vmatprep.subr.mxu0 0.0
  %287 = vmatpush1.msra.mxu0 %v237
  %288 = vmatprep.subr.mxu0 0.0
  %289 = vmatpush1.msra.mxu0 0.0
  %290 = vmatprep.subr.mxu0 0.0
  %291 = vmatpush1.msra.mxu0 0.0
  %292 = vmatprep.subr.mxu0 0.0
  %293 = vmatpush1.msra.mxu0 0.0
  %294 = vmatprep.subr.mxu0 0.0
  %295 = vmatpush1.msra.mxu0 0.0
  %296 = vmatprep.subr.mxu0 0.0
  %297 = vmatpush1.msra.mxu0 0.0
  %298 = vmatprep.subr.mxu0 0.0
  %299 = vmatpush1.msra.mxu0 0.0
  %300 = vmatprep.subr.mxu0 0.0
  %301 = vmatpush1.msra.mxu0 0.0
  %302 = vmatprep.subr.mxu0 0.0
  %303 = vmatpush1.msra.mxu0 0.0
  %304 = vmatprep.subr.mxu0 0.0
  %305 = vmatpush1.msra.mxu0 0.0
  %306 = vmatprep.subr.mxu0 0.0
  %307 = vmatpush1.msra.mxu0 0.0
  %308 = vmatprep.subr.mxu0 0.0
  %309 = vmatpush1.msra.mxu0 0.0
  %310 = vmatprep.subr.mxu0 0.0
  %311 = vmatpush1.msra.mxu0 0.0
  %312 = vmatprep.subr.mxu0 0.0
  %313 = vmatpush1.msra.mxu0 0.0
  %314 = vmatprep.subr.mxu0 0.0
  %315 = vmatpush1.msra.mxu0 0.0
  %316 = vmatprep.subr.mxu0 0.0
  %317 = vmatpush1.msra.mxu0 0.0
  %318 = vmatprep.subr.mxu0 0.0
  %319 = vmatpush1.msra.mxu0 0.0
  %320 = vmatprep.subr.mxu0 0.0
  %321 = vmatpush1.msra.mxu0 0.0
  %322 = vmatprep.subr.mxu0 0.0
  %323 = vmatpush1.msra.mxu0 0.0
  %324 = vmatprep.subr.mxu0 0.0
  %325 = vmatpush1.msra.mxu0 0.0
  %326 = vmatprep.subr.mxu0 0.0
  %327 = vmatpush1.msra.mxu0 0.0
  %328 = vmatprep.subr.mxu0 0.0
  %329 = vmatpush1.msra.mxu0 0.0
  %330 = vmatprep.subr.mxu0 0.0
  %331 = vmatpush1.msra.mxu0 0.0
  %332 = vmatprep.subr.mxu0 0.0
  %333 = vmatpush1.msra.mxu0 0.0
  %334 = vmatprep.subr.mxu0 0.0
  %335 = vmatpush1.msra.mxu0 0.0
  %336 = vmatprep.subr.mxu0 0.0
  %337 = vmatpush1.msra.mxu0 0.0
  %338 = vmatprep.subr.mxu0 0.0
  %339 = vmatpush1.msra.mxu0 0.0
  %340 = vmatprep.subr.mxu0 0.0
  %341 = vmatpush1.msra.mxu0 0.0
  %342 = vmatprep.subr.mxu0 0.0
  %343 = vmatpush1.msra.mxu0 0.0
  %344 = vmatprep.subr.mxu0 0.0
  %345 = vmatpush1.msra.mxu0 0.0
  %346 = vmatprep.subr.mxu0 0.0
  %347 = vmatpush1.msra.mxu0 0.0
  %348 = vmatprep.subr.mxu0 0.0
  %349 = vmatpush1.msra.mxu0 0.0
  %350 = vmatprep.mubr.f32.mxu0 0.0
  %351 = vmatmul.mubr.f32.gmra.mrb[0].mxu0 %v239
  %v352 = vpop.f32.mrb[0].mxu0
  %v353 = vadd.f32 0.0, %v352
  %v354 = vpop.f32.mrb[0].mxu0
  %355 = vmatprep.mubr.f32.mxu0 0.0
  %356 = vmatmul.mubr.f32.gmra.mrb[0].mxu0 %v242
  %v357 = vpop.f32.mrb[0].mxu0
  %v358 = vadd.f32 0.0, %v357
  %v359 = vpop.f32.mrb[0].mxu0
  %360 = vmatprep.mubr.f32.mxu0 0.0
  %361 = vmatmul.mubr.f32.gmra.mrb[0].mxu0 %v245
  %v362 = vpop.f32.mrb[0].mxu0
  %v363 = vadd.f32 0.0, %v362
  %v364 = vpop.f32.mrb[0].mxu0
  %365 = vmatprep.mubr.f32.mxu0 0.0
  %366 = vmatmul.mubr.f32.gmra.mrb[0].mxu0 %v248
  %v367 = vpop.f32.mrb[0].mxu0
  %v368 = vadd.f32 0.0, %v367
  %v369 = vpop.f32.mrb[0].mxu0
  %370 = vmatprep.mubr.f32.mxu0 0.0
  %371 = vmatmul.mubr.f32.gmra.mrb[0].mxu0 %v251
  %v372 = vpop.f32.mrb[0].mxu0
  %v373 = vadd.f32 0.0, %v372
  %v374 = vpop.f32.mrb[0].mxu0
  %375 = vmatprep.mubr.f32.mxu0 0.0
  %376 = vmatmul.mubr.f32.gmra.mrb[0].mxu0 %v254
  %v377 = vpop.f32.mrb[0].mxu0
  %v378 = vadd.f32 0.0, %v377
  %v379 = vpop.f32.mrb[0].mxu0
  %380 = vmatprep.mubr.f32.mxu0 0.0
  %381 = vmatmul.mubr.f32.gmra.mrb[0].mxu0 %v257
  %v382 = vpop.f32.mrb[0].mxu0
  %v383 = vadd.f32 0.0, %v382
  %v384 = vpop.f32.mrb[0].mxu0
  %385 = vmatprep.mubr.f32.mxu0 0.0
  %386 = vmatmul.mubr.f32.gmra.mrb[0].mxu0 %v260
  %v387 = vpop.f32.mrb[0].mxu0
  %v388 = vadd.f32 0.0, %v387
  %v389 = vpop.f32.mrb[0].mxu0
  %390 = vmatprep.mubr.f32.mxu0 0.0
  %391 = vmatmul.mubr.f32.gmra.mrb[0].mxu0 %v263
  %v392 = vpop.f32.mrb[0].mxu0
  %v393 = vadd.f32 0.0, %v392
  %v394 = vpop.f32.mrb[0].mxu0
  %395 = vmatprep.mubr.f32.mxu0 0.0
  %396 = vmatmul.mubr.f32.gmra.mrb[0].mxu0 %v266
  %v397 = vpop.f32.mrb[0].mxu0
  %v398 = vadd.f32 0.0, %v397
  %v399 = vpop.f32.mrb[0].mxu0
  %400 = vmatprep.mubr.f32.mxu0 0.0
  %401 = vmatmul.mubr.f32.gmra.mrb[0].mxu0 %v269
  %v402 = vpop.f32.mrb[0].mxu0
  %v403 = vadd.f32 0.0, %v402
  %v404 = vpop.f32.mrb[0].mxu0
  %405 = vmatprep.mubr.f32.mxu0 0.0
  %406 = vmatmul.mubr.f32.gmra.mrb[0].mxu0 %v272
  %v407 = vpop.f32.mrb[0].mxu0
  %v408 = vadd.f32 0.0, %v407
  %v409 = vpop.f32.mrb[0].mxu0
  %410 = vmatprep.mubr.f32.mxu0 0.0
  %411 = vmatmul.mubr.f32.gmra.mrb[0].mxu0 %v275
  %v412 = vpop.f32.mrb[0].mxu0
  %v413 = vadd.f32 0.0, %v412
  %v414 = vpop.f32.mrb[0].mxu0
  %415 = vmatprep.mubr.f32.mxu0 0.0
  %416 = vmatmul.mubr.f32.gmra.mrb[0].mxu0 %v278
  %v417 = vpop.f32.mrb[0].mxu0
  %v418 = vadd.f32 0.0, %v417
  %v419 = vpop.f32.mrb[0].mxu0
  %420 = vmatprep.mubr.f32.mxu0 0.0
  %421 = vmatmul.mubr.f32.gmra.mrb[0].mxu0 %v281
  %v422 = vpop.f32.mrb[0].mxu0
  %v423 = vadd.f32 0.0, %v422
  %v424 = vpop.f32.mrb[0].mxu0
  %425 = vmatprep.mubr.f32.mxu0 0.0
  %426 = vmatmul.mubr.f32.gmra.mrb[0].mxu0 %v284
  %v427 = vpop.f32.mrb[0].mxu0
  %v428 = vadd.f32 0.0, %v427
  %v429 = vpop.f32.mrb[0].mxu0
  %430 = vdwg.mxu0
  %vm431 = vcmask 785408
  %432 = vst.msk [vmem:[%s2] sm:$0xff] %vm431, %v353
  %433 = vst.msk [vmem:[%s2 + $0x8] sm:$0xff] %vm431, %v358
  %434 = vst.msk [vmem:[%s2 + $0x10] sm:$0xff] %vm431, %v363
  %435 = vst.msk [vmem:[%s2 + $0x18] sm:$0xff] %vm431, %v368
  %436 = vst.msk [vmem:[%s2 + $0x20] sm:$0xff] %vm431, %v373
  %437 = vst.msk [vmem:[%s2 + $0x28] sm:$0xff] %vm431, %v378
  %438 = vst.msk [vmem:[%s2 + $0x30] sm:$0xff] %vm431, %v383
  %439 = vst.msk [vmem:[%s2 + $0x38] sm:$0xff] %vm431, %v388
  %440 = vst.msk [vmem:[%s2 + $0x40] sm:$0xff] %vm431, %v393
  %441 = vst.msk [vmem:[%s2 + $0x48] sm:$0xff] %vm431, %v398
  %442 = vst.msk [vmem:[%s2 + $0x50] sm:$0xff] %vm431, %v403
  %443 = vst.msk [vmem:[%s2 + $0x58] sm:$0xff] %vm431, %v408
  %444 = vst.msk [vmem:[%s2 + $0x60] sm:$0xff] %vm431, %v413
  %445 = vst.msk [vmem:[%s2 + $0x68] sm:$0xff] %vm431, %v418
  %446 = vst.msk [vmem:[%s2 + $0x70] sm:$0xff] %vm431, %v423
  %447 = vst.msk [vmem:[%s2 + $0x78] sm:$0xff] %vm431, %v428
  // Predicated region
  $region10: #{tpu_custom_call.1} parent=0 // pred_check
    _
  $region11: #{tpu_custom_call.1} parent=0 // pred_check_branch
    %449 = sbr.rel (0) target = $region13
  $region12: #{tpu_custom_call.1} parent=0 // pred_region
    _
  $region13: #{tpu_custom_call.1} parent=0 // pred_fallthru
    _
  // Predicated region
  $region14: #{tpu_custom_call.1} parent=0 // pred_check
    _
  $region15: #{tpu_custom_call.1} parent=0 // pred_check_branch
    %451 = sbr.rel (0) target = $region17
  $region16: #{tpu_custom_call.1} parent=0 // pred_region
    _
  $region17: #{tpu_custom_call.1} parent=0 // pred_fallthru
    _

</llo_original>
